<compile_context>
chip_gen: v5e
topology: v5e:2x2
jax: 0.10.0
libtpu: 0.0.40
codegen_flags: <defaults>
</compile_context>

<pallas_src>
import jax
import jax.numpy as jnp
from jax import lax
from jax.experimental import pallas as pl
from jax.experimental.pallas import tpu as pltpu

NEG_SLOPE = 0.01  # nn.LeakyReLU default


def _leaky(x):
    # max(x, slope*x) == LeakyReLU(x) for 0 < slope < 1 (one mul + one max).
    return jnp.maximum(x, NEG_SLOPE * x)


def _attention_critic_kernel(a_ref, s_ref,
                             w1_ref, b1_ref,
                             wc1a_ref, wc1b_ref, bc1_ref,
                             wc2_ref, bc2_ref,
                             q_ref):
    cd = w1_ref.dtype                       # MXU input dtype (bf16 by default)
    a = a_ref[...]                          # (A, Bb, adim)   batch-major
    s = s_ref[...]                          # (A, Bb, S)

    # enc_fc1 + LeakyReLU (weights pre-transposed to (in, out) in the wrapper).
    h = jnp.einsum("abi,aih->abh", a, w1_ref[...],
                   preferred_element_type=jnp.float32) + b1_ref[...]
    h = _leaky(h)                                                     # (A, Bb, H) f32

    # critic_fc1 on concat([h, state]):
    #   Wc1 @ [h; s] == Wc1[:, :H] @ h + Wc1[:, H:] @ s  (columns pre-split).
    y = (jnp.einsum("abk,akh->abh", h.astype(cd), wc1a_ref[...],
                    preferred_element_type=jnp.float32)
         + jnp.einsum("abk,akh->abh", s, wc1b_ref[...],
                      preferred_element_type=jnp.float32)
         + bc1_ref[...])
    y = _leaky(y)                                                     # (A, Bb, H) f32

    # critic_fc2
    all_q = jnp.einsum("abk,ako->abo", y.astype(cd), wc2_ref[...],
                       preferred_element_type=jnp.float32) + bc2_ref[...]  # (A, Bb, adim)

    # int_acs = actions.max(dim=1).indices (first occurrence on ties);
    # q = all_q.gather(1, int_acs), done as a one-hot mask multiply + lane reduce.
    # NOTE: exact float equality vs. the row max + min-index matches torch's
    # first-occurrence semantics for finite inputs; an all-NaN action row would
    # yield q == 0 instead of all_q[:, 0] (irrelevant for one-hot / finite actions).
    adim = a.shape[-1]
    af = a.astype(jnp.float32)                                        # tiny: lane width = adim
    row = lax.broadcasted_iota(jnp.int32, af.shape, 2)                # (A, Bb, adim)
    a_max = jnp.max(af, axis=2, keepdims=True)
    first_max = jnp.min(jnp.where(af == a_max, row, adim), axis=2, keepdims=True)
    onehot = (row == first_max).astype(jnp.float32)                   # exactly one 1 per row
    q = jnp.sum(all_q * onehot, axis=2, keepdims=True)                # (A, Bb, 1)

    q_ref[...] = q.astype(q_ref.dtype)


def _round_up(x, m):
    return ((x + m - 1) // m) * m


def _vmem_limit_bytes(A, block_b, adim, S, H, act_bytes):
    lane = lambda d: _round_up(max(d, 1), 128)
    bb = _round_up(block_b, 8)
    # double-buffered activation input tiles (minor dim padded to the 128-lane tile)
    inputs = 2 * A * bb * (lane(adim) + lane(S)) * act_bytes
    # double-buffered (A, bb, 1) f32 output tiles (lane-padded)
    outputs = 2 * A * bb * 128 * 4
    # rough bound for live f32 intermediates (h, y, all_q, mask slabs)
    inter = 4 * A * bb * lane(max(H, adim)) * 4
    est = inputs + outputs + inter
    return int(min(64 * 1024 * 1024, max(32 * 1024 * 1024, 2 * est)))


def attention_critic_forward(actions, states, params, *, block_b=None,
                             compute_dtype=jnp.bfloat16):
    """actions: (A, B, adim), states: (A, B, S) with S == hidden_dim (as the torch
    module's critic_fc1 requires).  params: per-agent weights stacked on a leading
    agent axis, torch (out, in) orientation:
        w1 (A,H,adim), b1 (A,H), wc1 (A,H,2H), bc1 (A,H), wc2 (A,adim,H), bc2 (A,adim)
    Returns q: (A, B, 1) float32.

    compute_dtype is the MXU-input dtype for activations/weights (bf16 default;
    accumulation is always f32).  Pass jnp.float32 for exact f32 parity.  For best
    HBM efficiency the caller should already hold actions/states in compute_dtype.
    """
    A, B, adim = actions.shape
    _, _, S = states.shape
    H = params["w1"].shape[1]
    assert S == H, "critic_fc1 expects sdim == hidden_dim (as used by the torch module)"
    # TODO(synk): heterogeneous per-agent (sdim, adim) (allowed by the torch module)
    # would need per-agent padding to a common width before stacking.

    # --- batch tiling --------------------------------------------------------
    if block_b is None:
        if B < 256:
            block_b = B                     # single tiny tile; per-step overhead dominates
        else:
            # >= 2 tiles (v7x: shardable over both TensorCores), 128-aligned, <= 2048.
            block_b = min(2048, _round_up(pl.cdiv(B, 2), 128))
    if block_b != B and block_b % 128 != 0:
        raise ValueError("block_b must equal B or be a multiple of 128")
    B_pad = _round_up(B, block_b)
    nb = B_pad // block_b

    # --- layout / dtype plumbing (weights are tiny; casts fuse under jit) ----
    cd = compute_dtype
    a_in = actions.astype(cd)
    s_in = states.astype(cd)
    if B_pad != B:                          # zero-pad the batch; padded rows sliced off below
        a_in = jnp.pad(a_in, ((0, 0), (0, B_pad - B), (0, 0)))
        s_in = jnp.pad(s_in, ((0, 0), (0, B_pad - B), (0, 0)))

    w1 = jnp.swapaxes(params["w1"], 1, 2).astype(cd)                  # (A, adim, H)
    wc1a = jnp.swapaxes(params["wc1"][:, :, :H], 1, 2).astype(cd)     # (A, H, H)  cols for h
    wc1b = jnp.swapaxes(params["wc1"][:, :, H:], 1, 2).astype(cd)     # (A, S, H)  cols for state
    wc2 = jnp.swapaxes(params["wc2"], 1, 2).astype(cd)                # (A, H, adim)
    b1 = params["b1"].astype(jnp.float32).reshape(A, 1, H)
    bc1 = params["bc1"].astype(jnp.float32).reshape(A, 1, H)
    bc2 = params["bc2"].astype(jnp.float32).reshape(A, 1, adim)

    const = lambda j: (0, 0, 0)             # weights/biases: resident across batch tiles
    # NOTE: at larger H/A one could add pipeline_mode=pl.Buffered(1) on the constant
    # weight specs to halve their VMEM footprint; negligible at H=32.
    grid_spec = pltpu.PrefetchScalarGridSpec(
        num_scalar_prefetch=0,
        grid=(nb,),
        in_specs=[
            pl.BlockSpec((A, block_b, adim), lambda j: (0, j, 0)),    # actions (batch-major)
            pl.BlockSpec((A, block_b, S),    lambda j: (0, j, 0)),    # states  (batch-major)
            pl.BlockSpec((A, adim, H), const),                        # w1^T
            pl.BlockSpec((A, 1, H),    const),                        # b1
            pl.BlockSpec((A, H, H),    const),                        # wc1^T (h columns)
            pl.BlockSpec((A, S, H),    const),                        # wc1^T (state columns)
            pl.BlockSpec((A, 1, H),    const),                        # bc1
            pl.BlockSpec((A, H, adim), const),                        # wc2^T
            pl.BlockSpec((A, 1, adim), const),                        # bc2
        ],
        out_specs=pl.BlockSpec((A, block_b, 1), lambda j: (0, j, 0)),
    )

    q = pl.pallas_call(
        _attention_critic_kernel,
        out_shape=jax.ShapeDtypeStruct((A, B_pad, 1), jnp.float32),
        grid_spec=grid_spec,
        compiler_params=pltpu.CompilerParams(
            dimension_semantics=("parallel",),
            vmem_limit_bytes=_vmem_limit_bytes(A, block_b, adim, S, H,
                                               jnp.dtype(cd).itemsize),
        ),
    )(a_in, s_in, w1, b1, wc1a, wc1b, bc1, wc2, bc2)

    return q[:, :B, :] if B_pad != B else q


def reference_forward(actions, states, params, compute_dtype=jnp.float32):
    """Pure-JAX reference of the torch forward (weights in (out, in) layout).
    compute_dtype lets the check mirror the kernel's bf16 rounding of
    activations/weights (accumulation is f32 either way)."""
    H = params["w1"].shape[1]
    r = lambda x: x.astype(compute_dtype).astype(jnp.float32)
    leaky = lambda x: jnp.maximum(x, NEG_SLOPE * x)
    a = r(actions)
    s = r(states)
    h = leaky(jnp.einsum("abi,ahi->abh", a, r(params["w1"])) + params["b1"][:, None, :])
    h = r(h)
    y = leaky(jnp.einsum("abk,ahk->abh", h, r(params["wc1"][:, :, :H]))
              + jnp.einsum("abk,ahk->abh", s, r(params["wc1"][:, :, H:]))
              + params["bc1"][:, None, :])
    y = r(y)
    all_q = jnp.einsum("abk,aok->abo", y, r(params["wc2"])) + params["bc2"][:, None, :]
    idx = jnp.argmax(a, axis=2)                                   # first occurrence on ties
    return jnp.take_along_axis(all_q, idx[..., None], axis=2)     # (A, B, 1)


if __name__ == "__main__":
    # Small shapes consistent with the module: A agents, sdim == hidden_dim
    # (required by critic_fc1) and adim discrete actions (one-hot, as in MAAC).
    A, B = 3, 8
    hidden_dim = 32
    sdim, adim = hidden_dim, 8
    H = hidden_dim

    key = jax.random.PRNGKey(0)
    ks = jax.random.split(key, 10)

    act_idx = jax.random.randint(ks[0], (A, B), 0, adim)
    actions = jax.nn.one_hot(act_idx, adim, dtype=jnp.float32)    # (A, B, adim)
    states = jax.random.normal(ks[1], (A, B, sdim), jnp.float32)  # (A, B, sdim)

    def init(k, shape, fan_in):
        bound = 1.0 / jnp.sqrt(fan_in)
        return jax.random.uniform(k, shape, jnp.float32, -bound, bound)

    params = {
        # enc_fc1: Linear(adim -> H), torch (out, in) layout
        "w1":  init(ks[2], (A, H, adim), adim),
        "b1":  init(ks[3], (A, H), adim),
        # critic_fc1: Linear(2H -> H)
        "wc1": init(ks[4], (A, H, 2 * H), 2 * H),
        "bc1": init(ks[5], (A, H), 2 * H),
        # critic_fc2: Linear(H -> adim)
        "wc2": init(ks[6], (A, adim, H), H),
        "bc2": init(ks[7], (A, adim), H),
    }

    q = jax.jit(attention_critic_forward)(actions, states, params)
    q = jax.block_until_ready(q)
    assert q.shape == (A, B, 1)

    # Tight check vs. a reference mirroring the kernel's bf16 rounding.
    q_ref_bf16 = reference_forward(actions, states, params, compute_dtype=jnp.bfloat16)
    assert jnp.allclose(q, q_ref_bf16, atol=2e-3, rtol=2e-3), \
        float(jnp.max(jnp.abs(q - q_ref_bf16)))
    # Loose check vs. the exact f32 torch semantics.
    q_ref_f32 = reference_forward(actions, states, params, compute_dtype=jnp.float32)
    assert jnp.allclose(q, q_ref_f32, atol=5e-2, rtol=5e-2), \
        float(jnp.max(jnp.abs(q - q_ref_f32)))

    print("KERNEL_OK")
</pallas_src>

<mosaic_0001>
module attributes {stable_mosaic.version = 11 : i64} {
  func.func @_attention_critic_kernel(%arg0: i32, %arg1: memref<3x8x8xbf16, #tpu.memory_space<vmem>>, %arg2: memref<3x8x32xbf16, #tpu.memory_space<vmem>>, %arg3: memref<3x8x32xbf16, #tpu.memory_space<vmem>>, %arg4: memref<3x1x32xf32, #tpu.memory_space<vmem>>, %arg5: memref<3x32x32xbf16, #tpu.memory_space<vmem>>, %arg6: memref<3x32x32xbf16, #tpu.memory_space<vmem>>, %arg7: memref<3x1x32xf32, #tpu.memory_space<vmem>>, %arg8: memref<3x32x8xbf16, #tpu.memory_space<vmem>>, %arg9: memref<3x1x8xf32, #tpu.memory_space<vmem>>, %arg10: memref<3x8x1xf32, #tpu.memory_space<vmem>>) attributes {dimension_semantics = [#tpu.dimension_semantics<parallel>], iteration_bounds = array<i64: 1>, scalar_prefetch = 0 : i64, scratch_operands = 0 : i64, tpu.core_type = #tpu.core_type<tc>, window_params = [{transform_indices = @transform_0, window_bounds = array<i64: 3, 8, 8>}, {transform_indices = @transform_1, window_bounds = array<i64: 3, 8, 32>}, {pipeline_mode = #tpu.pipeline_mode<synchronous>, transform_indices = @transform_2, window_bounds = array<i64: 3, 8, 32>}, {pipeline_mode = #tpu.pipeline_mode<synchronous>, transform_indices = @transform_3, window_bounds = array<i64: 3, 1, 32>}, {pipeline_mode = #tpu.pipeline_mode<synchronous>, transform_indices = @transform_4, window_bounds = array<i64: 3, 32, 32>}, {pipeline_mode = #tpu.pipeline_mode<synchronous>, transform_indices = @transform_5, window_bounds = array<i64: 3, 32, 32>}, {pipeline_mode = #tpu.pipeline_mode<synchronous>, transform_indices = @transform_6, window_bounds = array<i64: 3, 1, 32>}, {pipeline_mode = #tpu.pipeline_mode<synchronous>, transform_indices = @transform_7, window_bounds = array<i64: 3, 32, 8>}, {pipeline_mode = #tpu.pipeline_mode<synchronous>, transform_indices = @transform_8, window_bounds = array<i64: 3, 1, 8>}, {transform_indices = @transform_9, window_bounds = array<i64: 3, 8, 1>}]} {
    %c0 = arith.constant 0 : index
    %c0_0 = arith.constant 0 : index
    %c0_1 = arith.constant 0 : index
    %0 = vector.load %arg1[%c0, %c0_0, %c0_1] : memref<3x8x8xbf16, #tpu.memory_space<vmem>>, vector<3x8x8xbf16>
    %c0_2 = arith.constant 0 : index
    %c0_3 = arith.constant 0 : index
    %c0_4 = arith.constant 0 : index
    %1 = vector.load %arg2[%c0_2, %c0_3, %c0_4] : memref<3x8x32xbf16, #tpu.memory_space<vmem>>, vector<3x8x32xbf16>
    %c0_5 = arith.constant 0 : index
    %c0_6 = arith.constant 0 : index
    %c0_7 = arith.constant 0 : index
    %2 = vector.load %arg3[%c0_5, %c0_6, %c0_7] : memref<3x8x32xbf16, #tpu.memory_space<vmem>>, vector<3x8x32xbf16>
    "tpu.trace_start"() <{level = 10 : i32, message = "abi,aih->abh"}> : () -> ()
    %cst = arith.constant dense<0.000000e+00> : vector<3x8x32xf32>
    %3 = tpu.matmul %0, %2, %cst {dimension_numbers = #tpu.dot_dimension_numbers<[2], [1], [1], [2], [0, 0, 0, 1, 1, 2], [0], [0]>} : vector<3x8x8xbf16>, vector<3x8x32xbf16>, vector<3x8x32xf32> -> vector<3x8x32xf32>
    "tpu.trace_stop"() : () -> ()
    %c0_8 = arith.constant 0 : index
    %c0_9 = arith.constant 0 : index
    %c0_10 = arith.constant 0 : index
    %4 = vector.load %arg4[%c0_8, %c0_9, %c0_10] : memref<3x1x32xf32, #tpu.memory_space<vmem>>, vector<3x1x32xf32>
    %5 = vector.broadcast %4 : vector<3x1x32xf32> to vector<3x8x32xf32>
    %6 = arith.addf %3, %5 : vector<3x8x32xf32>
    %cst_11 = arith.constant 0.00999999977 : f32
    %7 = vector.broadcast %cst_11 : f32 to vector<3x8x32xf32>
    %8 = arith.mulf %7, %6 : vector<3x8x32xf32>
    %9 = arith.maximumf %6, %8 : vector<3x8x32xf32>
    %10 = arith.truncf %9 : vector<3x8x32xf32> to vector<3x8x32xbf16>
    %c0_12 = arith.constant 0 : index
    %c0_13 = arith.constant 0 : index
    %c0_14 = arith.constant 0 : index
    %11 = vector.load %arg5[%c0_12, %c0_13, %c0_14] : memref<3x32x32xbf16, #tpu.memory_space<vmem>>, vector<3x32x32xbf16>
    "tpu.trace_start"() <{level = 10 : i32, message = "abk,akh->abh"}> : () -> ()
    %cst_15 = arith.constant dense<0.000000e+00> : vector<3x8x32xf32>
    %12 = tpu.matmul %10, %11, %cst_15 {dimension_numbers = #tpu.dot_dimension_numbers<[2], [1], [1], [2], [0, 0, 0, 1, 1, 2], [0], [0]>} : vector<3x8x32xbf16>, vector<3x32x32xbf16>, vector<3x8x32xf32> -> vector<3x8x32xf32>
    "tpu.trace_stop"() : () -> ()
    %c0_16 = arith.constant 0 : index
    %c0_17 = arith.constant 0 : index
    %c0_18 = arith.constant 0 : index
    %13 = vector.load %arg6[%c0_16, %c0_17, %c0_18] : memref<3x32x32xbf16, #tpu.memory_space<vmem>>, vector<3x32x32xbf16>
    "tpu.trace_start"() <{level = 10 : i32, message = "abk,akh->abh"}> : () -> ()
    %cst_19 = arith.constant dense<0.000000e+00> : vector<3x8x32xf32>
    %14 = tpu.matmul %1, %13, %cst_19 {dimension_numbers = #tpu.dot_dimension_numbers<[2], [1], [1], [2], [0, 0, 0, 1, 1, 2], [0], [0]>} : vector<3x8x32xbf16>, vector<3x32x32xbf16>, vector<3x8x32xf32> -> vector<3x8x32xf32>
    "tpu.trace_stop"() : () -> ()
    %15 = arith.addf %12, %14 : vector<3x8x32xf32>
    %c0_20 = arith.constant 0 : index
    %c0_21 = arith.constant 0 : index
    %c0_22 = arith.constant 0 : index
    %16 = vector.load %arg7[%c0_20, %c0_21, %c0_22] : memref<3x1x32xf32, #tpu.memory_space<vmem>>, vector<3x1x32xf32>
    %17 = vector.broadcast %16 : vector<3x1x32xf32> to vector<3x8x32xf32>
    %18 = arith.addf %15, %17 : vector<3x8x32xf32>
    %cst_23 = arith.constant 0.00999999977 : f32
    %19 = vector.broadcast %cst_23 : f32 to vector<3x8x32xf32>
    %20 = arith.mulf %19, %18 : vector<3x8x32xf32>
    %21 = arith.maximumf %18, %20 : vector<3x8x32xf32>
    %22 = arith.truncf %21 : vector<3x8x32xf32> to vector<3x8x32xbf16>
    %c0_24 = arith.constant 0 : index
    %c0_25 = arith.constant 0 : index
    %c0_26 = arith.constant 0 : index
    %23 = vector.load %arg8[%c0_24, %c0_25, %c0_26] : memref<3x32x8xbf16, #tpu.memory_space<vmem>>, vector<3x32x8xbf16>
    "tpu.trace_start"() <{level = 10 : i32, message = "abk,ako->abo"}> : () -> ()
    %cst_27 = arith.constant dense<0.000000e+00> : vector<3x8x8xf32>
    %24 = tpu.matmul %22, %23, %cst_27 {dimension_numbers = #tpu.dot_dimension_numbers<[2], [1], [1], [2], [0, 0, 0, 1, 1, 2], [0], [0]>} : vector<3x8x32xbf16>, vector<3x32x8xbf16>, vector<3x8x8xf32> -> vector<3x8x8xf32>
    "tpu.trace_stop"() : () -> ()
    %c0_28 = arith.constant 0 : index
    %c0_29 = arith.constant 0 : index
    %c0_30 = arith.constant 0 : index
    %25 = vector.load %arg9[%c0_28, %c0_29, %c0_30] : memref<3x1x8xf32, #tpu.memory_space<vmem>>, vector<3x1x8xf32>
    %26 = vector.broadcast %25 : vector<3x1x8xf32> to vector<3x8x8xf32>
    %27 = arith.addf %24, %26 : vector<3x8x8xf32>
    %28 = arith.extf %0 : vector<3x8x8xbf16> to vector<3x8x8xf32>
    %29 = tpu.iota {dimensions = array<i32: 2>} : vector<3x8x8xi32>
    %cst_31 = arith.constant dense<0xFF800000> : vector<3x8xf32>
    %30 = vector.multi_reduction <maximumf>, %28, %cst_31 [2] : vector<3x8x8xf32> to vector<3x8xf32>
    %31 = vector.shape_cast %30 : vector<3x8xf32> to vector<3x8x1xf32>
    %32 = vector.broadcast %31 : vector<3x8x1xf32> to vector<3x8x8xf32>
    %33 = arith.cmpf oeq, %28, %32 : vector<3x8x8xf32>
    %c8_i32 = arith.constant 8 : i32
    %34 = vector.broadcast %c8_i32 : i32 to vector<3x8x8xi32>
    %35 = arith.select %33, %29, %34 : vector<3x8x8xi1>, vector<3x8x8xi32>
    %cst_32 = arith.constant dense<2147483647> : vector<3x8xi32>
    %36 = vector.multi_reduction <minsi>, %35, %cst_32 [2] : vector<3x8x8xi32> to vector<3x8xi32>
    %37 = vector.shape_cast %36 : vector<3x8xi32> to vector<3x8x1xi32>
    %38 = vector.broadcast %37 : vector<3x8x1xi32> to vector<3x8x8xi32>
    %39 = arith.cmpi eq, %29, %38 : vector<3x8x8xi32>
    %40 = arith.extui %39 : vector<3x8x8xi1> to vector<3x8x8xi32>
    %41 = arith.sitofp %40 : vector<3x8x8xi32> to vector<3x8x8xf32>
    %42 = arith.mulf %27, %41 : vector<3x8x8xf32>
    %cst_33 = arith.constant dense<0.000000e+00> : vector<3x8xf32>
    %43 = vector.multi_reduction <add>, %42, %cst_33 [2] : vector<3x8x8xf32> to vector<3x8xf32>
    %44 = vector.shape_cast %43 : vector<3x8xf32> to vector<3x8x1xf32>
    %c0_34 = arith.constant 0 : index
    %c0_35 = arith.constant 0 : index
    %c0_36 = arith.constant 0 : index
    %45 = vector.load %arg10[%c0_34, %c0_35, %c0_36] : memref<3x8x1xf32, #tpu.memory_space<vmem>>, vector<3x8x1xf32>
    tpu.vector_store %arg10[%c0_34, %c0_35, %c0_36], %44 {strides = array<i32>} : memref<3x8x1xf32, #tpu.memory_space<vmem>>, vector<3x8x1xf32>,
    return
  }
  func.func @transform_0(%arg0: i32) -> (i32, i32, i32) {
    %c0_i32 = arith.constant 0 : i32
    %c0_i32_0 = arith.constant 0 : i32
    %c0_i32_1 = arith.constant 0 : i32
    return %c0_i32, %arg0, %c0_i32_0 : i32, i32, i32
  }
  func.func @transform_1(%arg0: i32) -> (i32, i32, i32) {
    %c0_i32 = arith.constant 0 : i32
    %c0_i32_0 = arith.constant 0 : i32
    %c0_i32_1 = arith.constant 0 : i32
    return %c0_i32, %arg0, %c0_i32_0 : i32, i32, i32
  }
  func.func @transform_2(%arg0: i32) -> (i32, i32, i32) {
    %c0_i32 = arith.constant 0 : i32
    %c0_i32_0 = arith.constant 0 : i32
    %c0_i32_1 = arith.constant 0 : i32
    %c0_i32_2 = arith.constant 0 : i32
    return %c0_i32, %c0_i32_0, %c0_i32_1 : i32, i32, i32
  }
  func.func @transform_3(%arg0: i32) -> (i32, i32, i32) {
    %c0_i32 = arith.constant 0 : i32
    %c0_i32_0 = arith.constant 0 : i32
    %c0_i32_1 = arith.constant 0 : i32
    %c0_i32_2 = arith.constant 0 : i32
    return %c0_i32, %c0_i32_0, %c0_i32_1 : i32, i32, i32
  }
  func.func @transform_4(%arg0: i32) -> (i32, i32, i32) {
    %c0_i32 = arith.constant 0 : i32
    %c0_i32_0 = arith.constant 0 : i32
    %c0_i32_1 = arith.constant 0 : i32
    %c0_i32_2 = arith.constant 0 : i32
    return %c0_i32, %c0_i32_0, %c0_i32_1 : i32, i32, i32
  }
  func.func @transform_5(%arg0: i32) -> (i32, i32, i32) {
    %c0_i32 = arith.constant 0 : i32
    %c0_i32_0 = arith.constant 0 : i32
    %c0_i32_1 = arith.constant 0 : i32
    %c0_i32_2 = arith.constant 0 : i32
    return %c0_i32, %c0_i32_0, %c0_i32_1 : i32, i32, i32
  }
  func.func @transform_6(%arg0: i32) -> (i32, i32, i32) {
    %c0_i32 = arith.constant 0 : i32
    %c0_i32_0 = arith.constant 0 : i32
    %c0_i32_1 = arith.constant 0 : i32
    %c0_i32_2 = arith.constant 0 : i32
    return %c0_i32, %c0_i32_0, %c0_i32_1 : i32, i32, i32
  }
  func.func @transform_7(%arg0: i32) -> (i32, i32, i32) {
    %c0_i32 = arith.constant 0 : i32
    %c0_i32_0 = arith.constant 0 : i32
    %c0_i32_1 = arith.constant 0 : i32
    %c0_i32_2 = arith.constant 0 : i32
    return %c0_i32, %c0_i32_0, %c0_i32_1 : i32, i32, i32
  }
  func.func @transform_8(%arg0: i32) -> (i32, i32, i32) {
    %c0_i32 = arith.constant 0 : i32
    %c0_i32_0 = arith.constant 0 : i32
    %c0_i32_1 = arith.constant 0 : i32
    %c0_i32_2 = arith.constant 0 : i32
    return %c0_i32, %c0_i32_0, %c0_i32_1 : i32, i32, i32
  }
  func.func @transform_9(%arg0: i32) -> (i32, i32, i32) {
    %c0_i32 = arith.constant 0 : i32
    %c0_i32_0 = arith.constant 0 : i32
    %c0_i32_1 = arith.constant 0 : i32
    return %c0_i32, %arg0, %c0_i32_0 : i32, i32, i32
  }
}

</mosaic_0001>

<llo_original>
// kernel: attention_critic_forward.1
$region0: #{attention_critic_forward.1}
  #allocation0 [shape = 'u32[]', space=smem, size = 0x4, offset = 0x4, fixed_abs, tag = 'smem constant byte address 0x4 - core index']
  #allocation1 [shape = 'u32[72,128]{1,0:T(1,128)}', space=vmem, size = 0x9000, scoped, tag = 'internal scratch']
  %s0 = inlined_call_operand.vmem [shape: bf16[3,8,8], index: 0, kind: input, shape index: {}]
  %s1 = inlined_call_operand.vmem [shape: bf16[3,8,32], index: 1, kind: input, shape index: {}]
  %s2 = inlined_call_operand.vmem [shape: bf16[3,8,32], index: 2, kind: input, shape index: {}]
  %s3 = inlined_call_operand.vmem [shape: f32[3,1,32], index: 3, kind: input, shape index: {}]
  %s4 = inlined_call_operand.vmem [shape: bf16[3,32,32], index: 4, kind: input, shape index: {}]
  %s5 = inlined_call_operand.vmem [shape: bf16[3,32,32], index: 5, kind: input, shape index: {}]
  %s6 = inlined_call_operand.vmem [shape: f32[3,1,32], index: 6, kind: input, shape index: {}]
  %s7 = inlined_call_operand.vmem [shape: bf16[3,32,8], index: 7, kind: input, shape index: {}]
  %s8 = inlined_call_operand.vmem [shape: f32[3,1,8], index: 8, kind: input, shape index: {}]
  %s9 = inlined_call_operand.vmem [shape: f32[3,8,1], index: 9, kind: output, shape index: {}]
  %s10 = sld [smem:[#allocation0]]
  $region46: #{attention_critic_forward.1} parent=0
    _
  %s12 = ssub.s32 1, %s10
  %s13 = scalar_select 0, %s12, %s10
  // Predicated region
  $region2: #{attention_critic_forward.1} parent=0 // pred_check
    _
  $region3: #{attention_critic_forward.1} parent=0 // pred_check_branch
    %15 = sbr.rel (0) target = $region5
  $region4: #{attention_critic_forward.1} parent=0 // pred_region
    _
  $region5: #{attention_critic_forward.1} parent=0 // pred_fallthru
    _
  // Predicated region
  $region6: #{attention_critic_forward.1} parent=0 // pred_check
    _
  $region7: #{attention_critic_forward.1} parent=0 // pred_check_branch
    %17 = sbr.rel (0) target = $region9
  $region8: #{attention_critic_forward.1} parent=0 // pred_region
    _
  $region9: #{attention_critic_forward.1} parent=0 // pred_fallthru
    _
  // Predicated region
  $region10: #{attention_critic_forward.1} parent=0 // pred_check
    _
  $region11: #{attention_critic_forward.1} parent=0 // pred_check_branch
    %19 = sbr.rel (0) target = $region13
  $region12: #{attention_critic_forward.1} parent=0 // pred_region
    _
  $region13: #{attention_critic_forward.1} parent=0 // pred_fallthru
    _
  // Predicated region
  $region14: #{attention_critic_forward.1} parent=0 // pred_check
    _
  $region15: #{attention_critic_forward.1} parent=0 // pred_check_branch
    %21 = sbr.rel (0) target = $region17
  $region16: #{attention_critic_forward.1} parent=0 // pred_region
    _
  $region17: #{attention_critic_forward.1} parent=0 // pred_fallthru
    _
  // Predicated region
  $region18: #{attention_critic_forward.1} parent=0 // pred_check
    _
  $region19: #{attention_critic_forward.1} parent=0 // pred_check_branch
    %23 = sbr.rel (0) target = $region21
  $region20: #{attention_critic_forward.1} parent=0 // pred_region
    _
  $region21: #{attention_critic_forward.1} parent=0 // pred_fallthru
    _
  // Predicated region
  $region22: #{attention_critic_forward.1} parent=0 // pred_check
    _
  $region23: #{attention_critic_forward.1} parent=0 // pred_check_branch
    %25 = sbr.rel (0) target = $region25
  $region24: #{attention_critic_forward.1} parent=0 // pred_region
    _
  $region25: #{attention_critic_forward.1} parent=0 // pred_fallthru
    _
  // Predicated region
  $region26: #{attention_critic_forward.1} parent=0 // pred_check
    _
  $region27: #{attention_critic_forward.1} parent=0 // pred_check_branch
    %27 = sbr.rel (0) target = $region29
  $region28: #{attention_critic_forward.1} parent=0 // pred_region
    _
  $region29: #{attention_critic_forward.1} parent=0 // pred_fallthru
    _
  // Predicated region
  $region30: #{attention_critic_forward.1} parent=0 // pred_check
    _
  $region31: #{attention_critic_forward.1} parent=0 // pred_check_branch
    %29 = sbr.rel (0) target = $region33
  $region32: #{attention_critic_forward.1} parent=0 // pred_region
    _
  $region33: #{attention_critic_forward.1} parent=0 // pred_fallthru
    _
  // Predicated region
  $region34: #{attention_critic_forward.1} parent=0 // pred_check
    _
  $region35: #{attention_critic_forward.1} parent=0 // pred_check_branch
    %31 = sbr.rel (0) target = $region37
  $region36: #{attention_critic_forward.1} parent=0 // pred_region
    _
  $region37: #{attention_critic_forward.1} parent=0 // pred_fallthru
    _
  %v33 = vld [vmem:[%s0] sm:$0xf]
  %v34 = vld [vmem:[%s0 + $0x4] sm:$0xf]
  %v35 = vld [vmem:[%s0 + $0x8] sm:$0xf]
  %v36 = vld [vmem:[%s1] sm:$0xf]
  %v37 = vld [vmem:[%s1 + $0x4] sm:$0xf]
  %v38 = vld [vmem:[%s1 + $0x8] sm:$0xf]
  %v39 = vld [vmem:[%s2] sm:$0xf]
  %v40 = vld [vmem:[%s2 + $0x4] sm:$0xf]
  %v41 = vld [vmem:[%s2 + $0x8] sm:$0xf]
  %v42 = vld [vmem:[%s3] sm:$0x1]
  %v43 = vld [vmem:[%s3 + $0x1] sm:$0x1]
  %v44 = vld [vmem:[%s3 + $0x2] sm:$0x1]
  %v48 = vperm.slane %v42, 0
  %v49 = vperm.slane %v43, 0
  %v50 = vperm.slane %v44, 0
  %vm54 = vcmask 64512
  %v56 = vsel %vm54, %v33, 0
  %vm58 = vcmask 1043456
  %v60 = vsel %vm58, %v39, 0
  %62 = vmatpush.bf16.msra.mxu0 0
  %63 = vmatpush.bf16.msra.mxu0 0
  %64 = vmatpush.bf16.msra.mxu0 0
  %65 = vmatpush.bf16.msra.mxu0 0
  %66 = vmatpush.bf16.msra.mxu0 0
  %67 = vmatpush.bf16.msra.mxu0 0
  %68 = vmatpush.bf16.msra.mxu0 0
  %69 = vmatpush.bf16.msra.mxu0 %v60
  %70 = vmatmul.bf16.gmra.mxu0 %v56
  %v71 = vpop.f32.mrf.mxu0
  %v72 = vadd.f32 %v48, %v71
  %v73 = vpop.f32.mrf.mxu0
  %74 = vdwg.mxu0
  %v76 = vsel %vm54, %v34, 0
  %v79 = vsel %vm58, %v40, 0
  %81 = vmatpush.bf16.msra.mxu0 0
  %82 = vmatpush.bf16.msra.mxu0 0
  %83 = vmatpush.bf16.msra.mxu0 0
  %84 = vmatpush.bf16.msra.mxu0 0
  %85 = vmatpush.bf16.msra.mxu0 0
  %86 = vmatpush.bf16.msra.mxu0 0
  %87 = vmatpush.bf16.msra.mxu0 0
  %88 = vmatpush.bf16.msra.mxu0 %v79
  %89 = vmatmul.bf16.gmra.mxu0 %v76
  %v90 = vpop.f32.mrf.mxu0
  %v91 = vadd.f32 %v49, %v90
  %v92 = vpop.f32.mrf.mxu0
  %93 = vdwg.mxu0
  %v95 = vsel %vm54, %v35, 0
  %v98 = vsel %vm58, %v41, 0
  %100 = vmatpush.bf16.msra.mxu0 0
  %101 = vmatpush.bf16.msra.mxu0 0
  %102 = vmatpush.bf16.msra.mxu0 0
  %103 = vmatpush.bf16.msra.mxu0 0
  %104 = vmatpush.bf16.msra.mxu0 0
  %105 = vmatpush.bf16.msra.mxu0 0
  %106 = vmatpush.bf16.msra.mxu0 0
  %107 = vmatpush.bf16.msra.mxu0 %v98
  %108 = vmatmul.bf16.gmra.mxu0 %v95
  %v109 = vpop.f32.mrf.mxu0
  %v110 = vadd.f32 %v50, %v109
  %v111 = vpop.f32.mrf.mxu0
  %112 = vdwg.mxu0
  %v113 = vmul.f32 %v72, 0.01
  %v114 = vmul.f32 %v91, 0.01
  %v115 = vmul.f32 %v110, 0.01
  %v116 = vmax.f32 %v72, %v113
  %v117 = vmax.f32 %v91, %v114
  %v118 = vmax.f32 %v110, %v115
  %v119 = vpack.c.bf16 %v116, %v116
  %v120 = vpack.c.bf16 %v117, %v117
  %v121 = vpack.c.bf16 %v118, %v118
  %v122 = vld [vmem:[%s4] sm:$0xf]
  %v123 = vld [vmem:[%s4 + $0x4] sm:$0xf]
  %v124 = vld [vmem:[%s4 + $0x8] sm:$0xf]
  %v125 = vld [vmem:[%s4 + $0xc] sm:$0xf]
  %v126 = vld [vmem:[%s4 + $0x10] sm:$0xf]
  %v127 = vld [vmem:[%s4 + $0x14] sm:$0xf]
  %v128 = vld [vmem:[%s4 + $0x18] sm:$0xf]
  %v129 = vld [vmem:[%s4 + $0x1c] sm:$0xf]
  %v130 = vld [vmem:[%s4 + $0x20] sm:$0xf]
  %v131 = vld [vmem:[%s4 + $0x24] sm:$0xf]
  %v132 = vld [vmem:[%s4 + $0x28] sm:$0xf]
  %v133 = vld [vmem:[%s4 + $0x2c] sm:$0xf]
  %v134 = vld [vmem:[%s5] sm:$0xf]
  %v135 = vld [vmem:[%s5 + $0x4] sm:$0xf]
  %v136 = vld [vmem:[%s5 + $0x8] sm:$0xf]
  %v137 = vld [vmem:[%s5 + $0xc] sm:$0xf]
  %v138 = vld [vmem:[%s5 + $0x10] sm:$0xf]
  %v139 = vld [vmem:[%s5 + $0x14] sm:$0xf]
  %v140 = vld [vmem:[%s5 + $0x18] sm:$0xf]
  %v141 = vld [vmem:[%s5 + $0x1c] sm:$0xf]
  %v142 = vld [vmem:[%s5 + $0x20] sm:$0xf]
  %v143 = vld [vmem:[%s5 + $0x24] sm:$0xf]
  %v144 = vld [vmem:[%s5 + $0x28] sm:$0xf]
  %v145 = vld [vmem:[%s5 + $0x2c] sm:$0xf]
  %v150 = vunpack.c.l.b16 %v134
  %v151 = vunpack.c.l.b16 %v135
  %v152 = vunpack.c.l.b16 %v136
  %v153 = vunpack.c.l.b16 %v137
  %v154 = vpack.c.b16 %v151, %v150
  %v155 = vpack.c.b16 %v153, %v152
  %vm158 = vcmask 261120
  %v160 = vsel %vm158, %v36, 0
  %162 = vmatpush.bf16.msra.mxu0 0
  %163 = vmatpush.bf16.msra.mxu0 0
  %164 = vmatpush.bf16.msra.mxu0 0
  %165 = vmatpush.bf16.msra.mxu0 0
  %166 = vmatpush.bf16.msra.mxu0 0
  %167 = vmatpush.bf16.msra.mxu0 0
  %168 = vmatpush.bf16.msra.mxu0 %v155
  %169 = vmatpush.bf16.msra.mxu0 %v154
  %170 = vmatmul.bf16.gmra.mxu0 %v160
  %v171 = vpop.f32.mrf.mxu0
  %v172 = vadd.f32 0.0, %v171
  %v173 = vpop.f32.mrf.mxu0
  %174 = vdwg.mxu0
  %v179 = vunpack.c.l.b16 %v138
  %v180 = vunpack.c.l.b16 %v139
  %v181 = vunpack.c.l.b16 %v140
  %v182 = vunpack.c.l.b16 %v141
  %v183 = vpack.c.b16 %v180, %v179
  %v184 = vpack.c.b16 %v182, %v181
  %v188 = vsel %vm158, %v37, 0
  %190 = vmatpush.bf16.msra.mxu0 0
  %191 = vmatpush.bf16.msra.mxu0 0
  %192 = vmatpush.bf16.msra.mxu0 0
  %193 = vmatpush.bf16.msra.mxu0 0
  %194 = vmatpush.bf16.msra.mxu0 0
  %195 = vmatpush.bf16.msra.mxu0 0
  %196 = vmatpush.bf16.msra.mxu0 %v184
  %197 = vmatpush.bf16.msra.mxu0 %v183
  %198 = vmatmul.bf16.gmra.mxu0 %v188
  %v199 = vpop.f32.mrf.mxu0
  %v200 = vadd.f32 0.0, %v199
  %v201 = vpop.f32.mrf.mxu0
  %202 = vdwg.mxu0
  %v207 = vunpack.c.l.b16 %v142
  %v208 = vunpack.c.l.b16 %v143
  %v209 = vunpack.c.l.b16 %v144
  %v210 = vunpack.c.l.b16 %v145
  %v211 = vpack.c.b16 %v208, %v207
  %v212 = vpack.c.b16 %v210, %v209
  %v216 = vsel %vm158, %v38, 0
  %218 = vmatpush.bf16.msra.mxu0 0
  %219 = vmatpush.bf16.msra.mxu0 0
  %220 = vmatpush.bf16.msra.mxu0 0
  %221 = vmatpush.bf16.msra.mxu0 0
  %222 = vmatpush.bf16.msra.mxu0 0
  %223 = vmatpush.bf16.msra.mxu0 0
  %224 = vmatpush.bf16.msra.mxu0 %v212
  %225 = vmatpush.bf16.msra.mxu0 %v211
  %226 = vmatmul.bf16.gmra.mxu0 %v216
  %v227 = vpop.f32.mrf.mxu0
  %v228 = vadd.f32 0.0, %v227
  %v229 = vpop.f32.mrf.mxu0
  %230 = vdwg.mxu0
  %v235 = vunpack.c.l.b16 %v122
  %v236 = vunpack.c.l.b16 %v123
  %v237 = vunpack.c.l.b16 %v124
  %v238 = vunpack.c.l.b16 %v125
  %v239 = vpack.c.b16 %v236, %v235
  %v240 = vpack.c.b16 %v238, %v237
  %v244 = vsel %vm158, %v119, 0
  %246 = vmatpush.bf16.msra.mxu0 0
  %247 = vmatpush.bf16.msra.mxu0 0
  %248 = vmatpush.bf16.msra.mxu0 0
  %249 = vmatpush.bf16.msra.mxu0 0
  %250 = vmatpush.bf16.msra.mxu0 0
  %251 = vmatpush.bf16.msra.mxu0 0
  %252 = vmatpush.bf16.msra.mxu0 %v240
  %253 = vmatpush.bf16.msra.mxu0 %v239
  %254 = vmatmul.bf16.gmra.mxu0 %v244
  %v255 = vpop.f32.mrf.mxu0
  %v256 = vadd.f32 %v172, %v255
  %v257 = vpop.f32.mrf.mxu0
  %258 = vdwg.mxu0
  %v263 = vunpack.c.l.b16 %v126
  %v264 = vunpack.c.l.b16 %v127
  %v265 = vunpack.c.l.b16 %v128
  %v266 = vunpack.c.l.b16 %v129
  %v267 = vpack.c.b16 %v264, %v263
  %v268 = vpack.c.b16 %v266, %v265
  %v272 = vsel %vm158, %v120, 0
  %274 = vmatpush.bf16.msra.mxu0 0
  %275 = vmatpush.bf16.msra.mxu0 0
  %276 = vmatpush.bf16.msra.mxu0 0
  %277 = vmatpush.bf16.msra.mxu0 0
  %278 = vmatpush.bf16.msra.mxu0 0
  %279 = vmatpush.bf16.msra.mxu0 0
  %280 = vmatpush.bf16.msra.mxu0 %v268
  %281 = vmatpush.bf16.msra.mxu0 %v267
  %282 = vmatmul.bf16.gmra.mxu0 %v272
  %v283 = vpop.f32.mrf.mxu0
  %v284 = vadd.f32 %v200, %v283
  %v285 = vpop.f32.mrf.mxu0
  %286 = vdwg.mxu0
  %v291 = vunpack.c.l.b16 %v130
  %v292 = vunpack.c.l.b16 %v131
  %v293 = vunpack.c.l.b16 %v132
  %v294 = vunpack.c.l.b16 %v133
  %v295 = vpack.c.b16 %v292, %v291
  %v296 = vpack.c.b16 %v294, %v293
  %v300 = vsel %vm158, %v121, 0
  %302 = vmatpush.bf16.msra.mxu0 0
  %303 = vmatpush.bf16.msra.mxu0 0
  %304 = vmatpush.bf16.msra.mxu0 0
  %305 = vmatpush.bf16.msra.mxu0 0
  %306 = vmatpush.bf16.msra.mxu0 0
  %307 = vmatpush.bf16.msra.mxu0 0
  %308 = vmatpush.bf16.msra.mxu0 %v296
  %309 = vmatpush.bf16.msra.mxu0 %v295
  %310 = vmatmul.bf16.gmra.mxu0 %v300
  %v311 = vpop.f32.mrf.mxu0
  %v312 = vadd.f32 %v228, %v311
  %v313 = vpop.f32.mrf.mxu0
  %314 = vdwg.mxu0
  %v315 = vld [vmem:[%s6] sm:$0x1]
  %v316 = vld [vmem:[%s6 + $0x1] sm:$0x1]
  %v317 = vld [vmem:[%s6 + $0x2] sm:$0x1]
  %v321 = vperm.slane %v315, 0
  %v322 = vperm.slane %v316, 0
  %v323 = vperm.slane %v317, 0
  %v327 = vadd.f32 %v256, %v321
  %v328 = vadd.f32 %v284, %v322
  %v329 = vadd.f32 %v312, %v323
  %v330 = vmul.f32 %v327, 0.01
  %v331 = vmul.f32 %v328, 0.01
  %v332 = vmul.f32 %v329, 0.01
  %v333 = vmax.f32 %v327, %v330
  %v334 = vmax.f32 %v328, %v331
  %v335 = vmax.f32 %v329, %v332
  %v336 = vpack.c.bf16 %v333, %v333
  %v337 = vpack.c.bf16 %v334, %v334
  %v338 = vpack.c.bf16 %v335, %v335
  %v339 = vld [vmem:[%s7] sm:$0xf]
  %v340 = vld [vmem:[%s7 + $0x4] sm:$0xf]
  %v341 = vld [vmem:[%s7 + $0x8] sm:$0xf]
  %v342 = vld [vmem:[%s7 + $0xc] sm:$0xf]
  %v343 = vld [vmem:[%s7 + $0x10] sm:$0xf]
  %v344 = vld [vmem:[%s7 + $0x14] sm:$0xf]
  %v345 = vld [vmem:[%s7 + $0x18] sm:$0xf]
  %v346 = vld [vmem:[%s7 + $0x1c] sm:$0xf]
  %v347 = vld [vmem:[%s7 + $0x20] sm:$0xf]
  %v348 = vld [vmem:[%s7 + $0x24] sm:$0xf]
  %v349 = vld [vmem:[%s7 + $0x28] sm:$0xf]
  %v350 = vld [vmem:[%s7 + $0x2c] sm:$0xf]
  %v351 = vld [vmem:[%s8] sm:$0x1]
  %v352 = vld [vmem:[%s8 + $0x1] sm:$0x1]
  %v353 = vld [vmem:[%s8 + $0x2] sm:$0x1]
  %v357 = vperm.slane %v351, 0
  %v358 = vperm.slane %v352, 0
  %v359 = vperm.slane %v353, 0
  %v367 = vunpack.c.l.b16 %v339
  %v368 = vunpack.c.l.b16 %v340
  %v369 = vunpack.c.l.b16 %v341
  %v370 = vunpack.c.l.b16 %v342
  %v371 = vpack.c.b16 %v368, %v367
  %v372 = vpack.c.b16 %v370, %v369
  %v376 = vsel %vm158, %v336, 0
  %378 = vmatpush.bf16.msra.mxu0 0
  %379 = vmatpush.bf16.msra.mxu0 0
  %380 = vmatpush.bf16.msra.mxu0 0
  %381 = vmatpush.bf16.msra.mxu0 0
  %382 = vmatpush.bf16.msra.mxu0 0
  %383 = vmatpush.bf16.msra.mxu0 0
  %384 = vmatpush.bf16.msra.mxu0 %v372
  %385 = vmatpush.bf16.msra.mxu0 %v371
  %386 = vmatmul.bf16.gmra.mxu0 %v376
  %v387 = vpop.f32.mrf.mxu0
  %v388 = vadd.f32 %v357, %v387
  %v389 = vpop.f32.mrf.mxu0
  %390 = vdwg.mxu0
  %v395 = vunpack.c.l.b16 %v343
  %v396 = vunpack.c.l.b16 %v344
  %v397 = vunpack.c.l.b16 %v345
  %v398 = vunpack.c.l.b16 %v346
  %v399 = vpack.c.b16 %v396, %v395
  %v400 = vpack.c.b16 %v398, %v397
  %v404 = vsel %vm158, %v337, 0
  %406 = vmatpush.bf16.msra.mxu0 0
  %407 = vmatpush.bf16.msra.mxu0 0
  %408 = vmatpush.bf16.msra.mxu0 0
  %409 = vmatpush.bf16.msra.mxu0 0
  %410 = vmatpush.bf16.msra.mxu0 0
  %411 = vmatpush.bf16.msra.mxu0 0
  %412 = vmatpush.bf16.msra.mxu0 %v400
  %413 = vmatpush.bf16.msra.mxu0 %v399
  %414 = vmatmul.bf16.gmra.mxu0 %v404
  %v415 = vpop.f32.mrf.mxu0
  %v416 = vadd.f32 %v358, %v415
  %v417 = vpop.f32.mrf.mxu0
  %418 = vdwg.mxu0
  %v423 = vunpack.c.l.b16 %v347
  %v424 = vunpack.c.l.b16 %v348
  %v425 = vunpack.c.l.b16 %v349
  %v426 = vunpack.c.l.b16 %v350
  %v427 = vpack.c.b16 %v424, %v423
  %v428 = vpack.c.b16 %v426, %v425
  %v432 = vsel %vm158, %v338, 0
  %434 = vmatpush.bf16.msra.mxu0 0
  %435 = vmatpush.bf16.msra.mxu0 0
  %436 = vmatpush.bf16.msra.mxu0 0
  %437 = vmatpush.bf16.msra.mxu0 0
  %438 = vmatpush.bf16.msra.mxu0 0
  %439 = vmatpush.bf16.msra.mxu0 0
  %440 = vmatpush.bf16.msra.mxu0 %v428
  %441 = vmatpush.bf16.msra.mxu0 %v427
  %442 = vmatmul.bf16.gmra.mxu0 %v432
  %v443 = vpop.f32.mrf.mxu0
  %v444 = vadd.f32 %v359, %v443
  %v445 = vpop.f32.mrf.mxu0
  %446 = vdwg.mxu0
  %v447 = vunpack.c.l.bf16 %v33
  %v448 = vunpack.c.l.bf16 %v34
  %v449 = vunpack.c.l.bf16 %v35
  %v450 = vlaneseq
  %v451 = vand.u32 %v450, 127
  %v452 = vsel %vm54, %v447, -inf
  %453 = vmax.xlane.f32.xlu0 %v452
  %v454 = vpop.xlane.xlu0 %453
  %v455 = vsel %vm54, %v448, -inf
  %456 = vmax.xlane.f32.xlu0 %v455
  %v457 = vpop.xlane.xlu0 %456
  %v458 = vsel %vm54, %v449, -inf
  %459 = vmax.xlane.f32.xlu0 %v458
  %v460 = vpop.xlane.xlu0 %459
  %vm461 = vcmp.eq.f32.partialorder %v447, %v454
  %vm462 = vcmp.eq.f32.partialorder %v448, %v457
  %vm463 = vcmp.eq.f32.partialorder %v449, %v460
  %v464 = vsel %vm461, %v451, 8
  %v465 = vsel %vm462, %v451, 8
  %v466 = vsel %vm463, %v451, 8
  %v467 = vsel %vm54, %v464, 2147483647
  %v468 = vand.u32 %v467, 65535
  %v469 = vshra.s32 %v467, 16
  %v470 = vcvt.s32.f32 %v468
  %v471 = vcvt.s32.f32 %v469
  %472 = vmin.xlane.f32.xlu0 %v471
  %v473 = vpop.xlane.xlu0 %472
  %vm474 = vcmp.eq.f32.partialorder %v471, %v473
  %v475 = vsel %vm474, %v470, inf
  %476 = vmin.xlane.f32.xlu0 %v475
  %v477 = vpop.xlane.xlu0 %476
  %v478 = vcvt.f32.s32 %v477
  %v479 = vcvt.f32.s32 %v473
  %v480 = vshll.u32 %v479, 16
  %v481 = vadd.s32 %v480, %v478
  %v482 = vsel %vm54, %v465, 2147483647
  %v483 = vand.u32 %v482, 65535
  %v484 = vshra.s32 %v482, 16
  %v485 = vcvt.s32.f32 %v483
  %v486 = vcvt.s32.f32 %v484
  %487 = vmin.xlane.f32.xlu0 %v486
  %v488 = vpop.xlane.xlu0 %487
  %vm489 = vcmp.eq.f32.partialorder %v486, %v488
  %v490 = vsel %vm489, %v485, inf
  %491 = vmin.xlane.f32.xlu0 %v490
  %v492 = vpop.xlane.xlu0 %491
  %v493 = vcvt.f32.s32 %v492
  %v494 = vcvt.f32.s32 %v488
  %v495 = vshll.u32 %v494, 16
  %v496 = vadd.s32 %v495, %v493
  %v497 = vsel %vm54, %v466, 2147483647
  %v498 = vand.u32 %v497, 65535
  %v499 = vshra.s32 %v497, 16
  %v500 = vcvt.s32.f32 %v498
  %v501 = vcvt.s32.f32 %v499
  %502 = vmin.xlane.f32.xlu0 %v501
  %v503 = vpop.xlane.xlu0 %502
  %vm504 = vcmp.eq.f32.partialorder %v501, %v503
  %v505 = vsel %vm504, %v500, inf
  %506 = vmin.xlane.f32.xlu0 %v505
  %v507 = vpop.xlane.xlu0 %506
  %v508 = vcvt.f32.s32 %v507
  %v509 = vcvt.f32.s32 %v503
  %v510 = vshll.u32 %v509, 16
  %v511 = vadd.s32 %v510, %v508
  %vm512 = vcmp.eq.s32.totalorder %v451, %v481
  %vm513 = vcmp.eq.s32.totalorder %v451, %v496
  %vm514 = vcmp.eq.s32.totalorder %v451, %v511
  %v515 = vsel %vm512, 1, 0
  %v516 = vsel %vm513, 1, 0
  %v517 = vsel %vm514, 1, 0
  %v518 = vcvt.s32.f32 %v515
  %v519 = vcvt.s32.f32 %v516
  %v520 = vcvt.s32.f32 %v517
  %v521 = vmul.f32 %v388, %v518
  %v522 = vmul.f32 %v416, %v519
  %v523 = vmul.f32 %v444, %v520
  %v524 = vsel %vm54, %v521, 0.0
  %525 = vadd.xlane.f32.xlu0 %v524
  %v526 = vpop.xlane.xlu0 %525
  %v527 = vsel %vm54, %v522, 0.0
  %528 = vadd.xlane.f32.xlu0 %v527
  %v529 = vpop.xlane.xlu0 %528
  %v530 = vsel %vm54, %v523, 0.0
  %531 = vadd.xlane.f32.xlu0 %v530
  %v532 = vpop.xlane.xlu0 %531
  %vm533 = vcmask 7168
  %534 = vst.msk [vmem:[%s9] sm:$0xff] %vm533, %v526
  %535 = vst.msk [vmem:[%s9 + $0x8] sm:$0xff] %vm533, %v529
  %536 = vst.msk [vmem:[%s9 + $0x10] sm:$0xff] %vm533, %v532
  // Predicated region
  $region38: #{attention_critic_forward.1} parent=0 // pred_check
    _
  $region39: #{attention_critic_forward.1} parent=0 // pred_check_branch
    %538 = sbr.rel (0) target = $region41
  $region40: #{attention_critic_forward.1} parent=0 // pred_region
    _
  $region41: #{attention_critic_forward.1} parent=0 // pred_fallthru
    _
  // Predicated region
  $region42: #{attention_critic_forward.1} parent=0 // pred_check
    _
  $region43: #{attention_critic_forward.1} parent=0 // pred_check_branch
    %540 = sbr.rel (0) target = $region45
  $region44: #{attention_critic_forward.1} parent=0 // pred_region
    _
  $region45: #{attention_critic_forward.1} parent=0 // pred_fallthru
    _

</llo_original>
